<compile_context>
chip_gen: v6e
topology: v6e:2x2x1
jax: 0.10.0
libtpu: 0.0.40
codegen_flags: <defaults>
</compile_context>

<pallas_src>
import functools

import jax
import jax.numpy as jnp
from jax.experimental import pallas as pl
from jax.experimental.pallas import tpu as pltpu


def _round_up(x, m):
    return ((x + m - 1) // m) * m


def _corr2d_kernel_1row(w_ref, b_ref, x_ref, o_ref, *, kw, wo):
    """kh == 1 fast path: no halo block, no staging scratch.

    w_ref: (1, kw)       SMEM   weights
    b_ref: (1,)          SMEM   bias
    x_ref: (tile_h, w)   VMEM   input rows of this tile
    o_ref: (tile_h, wo)  VMEM   output rows of this tile
    """
    tile_h = o_ref.shape[0]
    acc = None
    for j in range(kw):
        # Static lane-offset slice straight from the input block; width wo so
        # the wrapped / out-of-range columns are never even computed.
        term = x_ref[pl.ds(0, tile_h), pl.ds(j, wo)].astype(jnp.float32)
        if acc is None:
            acc = w_ref[0, 0] * term + b_ref[0]      # bias folded into 1st tap
        else:
            acc = acc + w_ref[0, j] * term
    # Rows of a partial edge block beyond the real output are masked by Pallas
    # on store, so any garbage they contain is never written to HBM.
    o_ref[...] = acc.astype(o_ref.dtype)


def _corr2d_kernel(w_ref, b_ref, x_ref, halo_ref, o_ref, xs_ref, *, kh, kw, wo):
    """One row-tile of out = corr2d(x, w) + b for kh > 1.

    w_ref:    (kh, kw)         SMEM   weights
    b_ref:    (1,)             SMEM   bias
    x_ref:    (tile_h, w)      VMEM   input rows [t*tile_h, (t+1)*tile_h)
    halo_ref: (8, w)           VMEM   input rows starting at (t+1)*tile_h
    o_ref:    (tile_h, wo)     VMEM   output rows [t*tile_h, (t+1)*tile_h)
    xs_ref:   (tile_h + 8, w)  VMEM   f32 staging scratch (current + halo)
    """
    tile_h = o_ref.shape[0]

    # Stage the rows this tile needs into one f32 scratch (single pass; also
    # performs the dtype cast exactly once).  The taps below stream slices
    # directly from this ref, so the accumulator is the only long-lived
    # tile-sized SSA value (no concatenate, fewer spills).
    xs_ref[pl.ds(0, tile_h), :] = x_ref[...].astype(jnp.float32)
    xs_ref[pl.ds(tile_h, 8), :] = halo_ref[...].astype(jnp.float32)

    acc = None
    for i in range(kh):
        for j in range(kw):
            # (tile_h, wo) window at static (row, lane) offsets.  Columns >= wo
            # are never read, so column wrap/garbage cannot leak into results.
            term = xs_ref[pl.ds(i, tile_h), pl.ds(j, wo)]
            if acc is None:
                acc = w_ref[0, 0] * term + b_ref[0]  # bias folded into 1st tap
            else:
                acc = acc + w_ref[i, j] * term
    # Garbage rows of partial input/halo blocks only ever feed output rows
    # >= ho, which Pallas masks out of this store (partial edge output block).
    o_ref[...] = acc.astype(o_ref.dtype)


def _pick_tile_h(ho, w_in, in_itemsize):
    """Row-tile height from an explicit VMEM budget (generation-safe)."""
    # Per output row (bytes): 2x double-buffered input block + 2x f32 output
    # block + f32 staging scratch + ~2 live tile-sized temporaries (acc, term).
    per_row = w_in * (2 * in_itemsize + 2 * 4 + 4 + 2 * 4)
    budget = 12 * 1024 * 1024     # fits v5e's 16 MiB / v7x's 32 MiB scoped VMEM
    t = budget // max(per_row, 1)
    t = min(t, 512)               # ~0.5-2 MiB blocks already sit at HBM roofline
    ho8 = _round_up(max(ho, 1), 8)
    t = min(t, ho8)
    if ho8 >= 16:
        # Keep >= 2 independent "parallel" grid steps so both v7x TensorCores
        # get work (near-zero cost on single-TC v5e/v6e).
        t = min(t, _round_up(pl.cdiv(ho, 2), 8))
    # TODO(synk): for extremely wide images (budget forces t < 8) a second,
    # lane-tiled grid dimension over the width would be needed.
    return max(8, (t // 8) * 8)


def conv2d_forward(x, weight, bias, *, tile_h=None):
    """Equivalent of Conv2D.forward: corr2d(x, weight) + bias (float32)."""
    kh, kw = weight.shape
    h, w = x.shape
    ho, wo = h - kh + 1, w - kw + 1
    if ho < 1 or wo < 1:
        raise ValueError("kernel larger than input")
    if kh > 9:
        # TODO(synk): the 8-row halo block covers kernels up to 9 rows; taller
        # kernels would need a taller halo block (or a second halo input).
        raise NotImplementedError("row halo supports kernels up to 9 rows")

    weight = weight.astype(jnp.float32)
    bias = bias.astype(jnp.float32).reshape((1,))

    in_itemsize = jnp.dtype(x.dtype).itemsize
    if tile_h is None:
        tile_h = _pick_tile_h(ho, w, in_itemsize)
    tile_h = max(8, min(_round_up(tile_h, 8), _round_up(ho, 8)))
    n_tiles = pl.cdiv(ho, tile_h)

    smem = pl.BlockSpec(memory_space=pltpu.MemorySpace.SMEM)
    x_spec = pl.BlockSpec((tile_h, w), lambda t: (t, 0))       # full-width rows
    out_spec = pl.BlockSpec((tile_h, wo), lambda t: (t, 0))    # full-width rows

    # Rough VMEM need: pipelined blocks (2 buffers each) + scratch + temps.
    vmem_need = (tile_h * w * (2 * in_itemsize + 4)        # in blocks + scratch
                 + tile_h * wo * 2 * 4                     # out blocks
                 + tile_h * w * 2 * 4                      # live temporaries
                 + (1 << 20))                              # slack
    compiler_params = pltpu.CompilerParams(
        dimension_semantics=("parallel",),
        vmem_limit_bytes=int(min(40 << 20, max(16 << 20, vmem_need))),
    )
    cost = pl.CostEstimate(
        flops=2 * kh * kw * ho * wo,
        transcendentals=0,
        bytes_accessed=h * w * in_itemsize + ho * wo * 4,
    )

    if kh == 1:
        # No halo input / DMA and no staging scratch for 1-row kernels.
        kernel = functools.partial(_corr2d_kernel_1row, kw=kw, wo=wo)
        return pl.pallas_call(
            kernel,
            out_shape=jax.ShapeDtypeStruct((ho, wo), jnp.float32),
            grid=(n_tiles,),
            in_specs=[smem, smem, x_spec],
            out_specs=out_spec,
            compiler_params=compiler_params,
            cost_estimate=cost,
        )(weight, bias, x)

    # kh > 1: an 8-row halo block supplies the kh-1 rows past the current tile.
    hbpt = tile_h // 8                  # halo-block units (8 rows) per row tile
    last_halo_block = (h - 1) // 8      # last 8-row block that starts inside x
    # Clamp keeps the halo block index in bounds.  The clamp fires exactly when
    # (t+1)*tile_h >= h, and in that case every input row a *valid* output row
    # of tile t needs (<= ho-1+kh-1 = h-1) already lives inside the current
    # x block, so the (wrong) clamped halo data is never used for real output.
    halo_spec = pl.BlockSpec(
        (8, w), lambda t: (jnp.minimum((t + 1) * hbpt, last_halo_block), 0))

    kernel = functools.partial(_corr2d_kernel, kh=kh, kw=kw, wo=wo)
    return pl.pallas_call(
        kernel,
        out_shape=jax.ShapeDtypeStruct((ho, wo), jnp.float32),
        grid=(n_tiles,),
        in_specs=[smem, smem, x_spec, halo_spec],
        out_specs=out_spec,
        scratch_shapes=[pltpu.VMEM((tile_h + 8, w), jnp.float32)],
        compiler_params=compiler_params,
        cost_estimate=cost,
    )(weight, bias, x, x)


def _corr2d_ref(x, k):
    # Pure-JAX reference mirroring the PyTorch corr2d loop.
    kh, kw = k.shape
    ho, wo = x.shape[0] - kh + 1, x.shape[1] - kw + 1
    out = jnp.zeros((ho, wo), jnp.float32)
    xf = x.astype(jnp.float32)
    for i in range(kh):
        for j in range(kw):
            out = out + k[i, j].astype(jnp.float32) * xf[i:i + ho, j:j + wo]
    return out


if __name__ == "__main__":
    key = jax.random.PRNGKey(0)
    k_x, k_w, k_b, k_x2, k_w2, k_b2 = jax.random.split(key, 6)

    # 1) The exact toy from the script: x = ones(6, 8), k = [[1, -1]], no bias.
    x0 = jnp.ones((6, 8), jnp.float32)
    w0 = jnp.array([[1.0, -1.0]], jnp.float32)
    b0 = jnp.zeros((1,), jnp.float32)
    y0 = jax.block_until_ready(conv2d_forward(x0, w0, b0))
    assert y0.shape == (6, 7), y0.shape
    assert jnp.allclose(y0, jnp.zeros((6, 7), jnp.float32), atol=1e-6)

    # 2) Conv2D module semantics: random (1, 2) weight + random bias (kh == 1
    #    fast path, partial 8-row blocks on a 6-row image).
    x1 = jax.random.normal(k_x, (6, 8), dtype=jnp.float32)
    w1 = jax.random.normal(k_w, (1, 2), dtype=jnp.float32)   # torch.randn(kernel_size)
    b1 = jax.random.normal(k_b, (1,), dtype=jnp.float32)     # torch.randn(1)
    y1 = jax.block_until_ready(conv2d_forward(x1, w1, b1))
    ref1 = _corr2d_ref(x1, w1) + b1[0]
    assert y1.shape == (6, 7), y1.shape
    assert jnp.allclose(y1, ref1, atol=1e-5, rtol=1e-5), "mismatch vs reference (1x2)"

    # 3) (3, 3) kernel on a taller, non-128-multiple-width input: exercises the
    #    row grid, the halo block + clamped last-tile halo index, the staging
    #    scratch, and partial edge blocks (62 output rows, tile_h=16 -> 4
    #    steps, last one partial).
    x2 = jax.random.normal(k_x2, (64, 200), dtype=jnp.float32)
    w2 = jax.random.normal(k_w2, (3, 3), dtype=jnp.float32)
    b2 = jax.random.normal(k_b2, (1,), dtype=jnp.float32)
    ref2 = _corr2d_ref(x2, w2) + b2[0]
    y2 = jax.block_until_ready(conv2d_forward(x2, w2, b2, tile_h=16))
    assert y2.shape == (62, 198), y2.shape
    assert jnp.allclose(y2, ref2, atol=1e-4, rtol=1e-4), "mismatch vs reference (3x3)"

    #    Same problem through the automatic tile_h / VMEM-budget path.
    y2b = jax.block_until_ready(conv2d_forward(x2, w2, b2))
    assert jnp.allclose(y2b, ref2, atol=1e-4, rtol=1e-4), "mismatch (auto tile_h)"

    print("KERNEL_OK")
</pallas_src>

<mosaic_0001>
module attributes {stable_mosaic.version = 11 : i64} {
  func.func @_corr2d_kernel_1row(%arg0: i32, %arg1: memref<1x2xf32, #tpu.memory_space<smem>>, %arg2: memref<1xf32, #tpu.memory_space<smem>>, %arg3: memref<8x8xf32, #tpu.memory_space<vmem>>, %arg4: memref<8x7xf32, #tpu.memory_space<vmem>>) attributes {dimension_semantics = [#tpu.dimension_semantics<parallel>], iteration_bounds = array<i64: 1>, scalar_prefetch = 0 : i64, scratch_operands = 0 : i64, tpu.core_type = #tpu.core_type<tc>, window_params = [{transform_indices = @transform_0, window_bounds = array<i64: 1, 2>}, {transform_indices = @transform_1, window_bounds = array<i64: 1>}, {transform_indices = @transform_2, window_bounds = array<i64: 8, 8>}, {transform_indices = @transform_3, window_bounds = array<i64: 8, 7>}]} {
    %c0 = arith.constant 0 : index
    %c0_0 = arith.constant 0 : index
    %0 = vector.load %arg3[%c0, %c0_0] : memref<8x8xf32, #tpu.memory_space<vmem>>, vector<8x7xf32>
    %c0_1 = arith.constant 0 : index
    %c0_2 = arith.constant 0 : index
    %1 = memref.load %arg1[%c0_1, %c0_2] : memref<1x2xf32, #tpu.memory_space<smem>>
    %2 = vector.broadcast %1 : f32 to vector<8x7xf32>
    %3 = arith.mulf %2, %0 : vector<8x7xf32>
    %c0_3 = arith.constant 0 : index
    %4 = memref.load %arg2[%c0_3] : memref<1xf32, #tpu.memory_space<smem>>
    %5 = vector.broadcast %4 : f32 to vector<8x7xf32>
    %6 = arith.addf %3, %5 : vector<8x7xf32>
    %c0_4 = arith.constant 0 : index
    %c1 = arith.constant 1 : index
    %7 = vector.load %arg3[%c0_4, %c1] : memref<8x8xf32, #tpu.memory_space<vmem>>, vector<8x7xf32>
    %c0_5 = arith.constant 0 : index
    %c1_6 = arith.constant 1 : index
    %8 = memref.load %arg1[%c0_5, %c1_6] : memref<1x2xf32, #tpu.memory_space<smem>>
    %9 = vector.broadcast %8 : f32 to vector<8x7xf32>
    %10 = arith.mulf %9, %7 : vector<8x7xf32>
    %11 = arith.addf %6, %10 : vector<8x7xf32>
    %c0_7 = arith.constant 0 : index
    %c0_8 = arith.constant 0 : index
    %12 = vector.load %arg4[%c0_7, %c0_8] : memref<8x7xf32, #tpu.memory_space<vmem>>, vector<8x7xf32>
    tpu.vector_store %arg4[%c0_7, %c0_8], %11 {strides = array<i32>} : memref<8x7xf32, #tpu.memory_space<vmem>>, vector<8x7xf32>,
    return
  }
  func.func @transform_0(%arg0: i32) -> (i32, i32) {
    %c0_i32 = arith.constant 0 : i32
    %c0_i32_0 = arith.constant 0 : i32
    %c0_i32_1 = arith.constant 0 : i32
    return %c0_i32, %c0_i32_0 : i32, i32
  }
  func.func @transform_1(%arg0: i32) -> i32 {
    %c0_i32 = arith.constant 0 : i32
    %c0_i32_0 = arith.constant 0 : i32
    return %c0_i32 : i32
  }
  func.func @transform_2(%arg0: i32) -> (i32, i32) {
    %c0_i32 = arith.constant 0 : i32
    %c0_i32_0 = arith.constant 0 : i32
    return %arg0, %c0_i32 : i32, i32
  }
  func.func @transform_3(%arg0: i32) -> (i32, i32) {
    %c0_i32 = arith.constant 0 : i32
    %c0_i32_0 = arith.constant 0 : i32
    return %arg0, %c0_i32 : i32, i32
  }
}

</mosaic_0001>

<llo_original>
// kernel: tpu_custom_call.1
$region0: #{tpu_custom_call.1}
  #allocation0 [shape = 'u32[]', space=smem, size = 0x4, offset = 0x4, fixed_abs, tag = 'smem constant byte address 0x4 - core index']
  #allocation1 [shape = 'u32[144,128]{1,0:T(1,128)}', space=vmem, size = 0x12000, scoped, tag = 'internal scratch']
  #allocation2 [shape = 'f32[1]{0:T(128)S(6)}', space=smem, size = 0x200, scoped, tag = 'scoped memory for tpu_custom_call.1']
  %s0 = inlined_call_operand.vmem [shape: f32[1,2], index: 0, kind: input, shape index: {}]
  %s1 = inlined_call_operand.<no memory space> [shape: f32[1], index: 1, kind: input, shape index: {}]
  %s2 = inlined_call_operand.hbm [shape: f32[6,8], index: 2, kind: input, shape index: {}]
  %s3 = inlined_call_operand.hbm [shape: f32[6,7], index: 3, kind: output, shape index: {}]
  %s4 = sld [smem:[#allocation0]]
  $region30: #{tpu_custom_call.1} parent=0
    _
  %s6 = ssub.s32 1, %s4
  %s7 = scalar_select 0, %s6, %s4
  %8 = sst [smem:[#allocation2]] %s1
  $region1: #{tpu_custom_call.1} parent=0
    #allocation3 [shape = 'u8[512]{0}', space=smem, size = 0x200, scoped, tag = 'input window, operand 0, single buffered']
    #allocation4 [shape = 's32[1]{0}', space=sflag, size = 0x4, scoped, tag = 'scoped memory for tpu_custom_call.1']
    #allocation5 [shape = 's32[1]{0}', space=sflag, size = 0x4, scoped, tag = 'scoped memory for tpu_custom_call.1']
    #allocation6 [shape = 's32[1]{0}', space=sflag, size = 0x4, scoped, tag = 'scoped memory for tpu_custom_call.1']
    #allocation7 [shape = 'u8[4096]{0}', space=vmem, size = 0x1000, scoped, tag = 'input window, operand 2, single buffered']
    #allocation8 [shape = 'u8[4096]{0}', space=vmem, size = 0x1000, scoped, tag = 'output window, operand 0, single buffered']
    %9 = vsyncpa [#allocation6], 0
    %10 = vsyncpa [#allocation4], 0
    %11 = vsyncpa [#allocation5], 0
    // Predicated region
    $region2: #{tpu_custom_call.1} parent=1 // pred_check
      _
    $region3: #{tpu_custom_call.1} parent=1 // pred_check_branch
      %13 = sbr.rel (0) target = $region5
    $region4: #{tpu_custom_call.1} parent=1 // pred_region
      %s15 = ssub.s32 16, 16
      %16 = vsyncadd [#allocation6], %s15
      %s18 = sshll.u32 %s0, 4
      %s19 = int_to_ptr.vmem [resolvable:$true] %s18
      %21 = dma.vmem_to_smem %s19, 16, [#allocation3], [#allocation6]
    $region5: #{tpu_custom_call.1} parent=1 // pred_fallthru
      _
    // Predicated region
    $region6: #{tpu_custom_call.1} parent=1 // pred_check
      _
    $region7: #{tpu_custom_call.1} parent=1 // pred_check_branch
      %23 = sbr.rel (0) target = $region9
    $region8: #{tpu_custom_call.1} parent=1 // pred_region
      _
    $region9: #{tpu_custom_call.1} parent=1 // pred_fallthru
      _
    // Predicated region
    $region10: #{tpu_custom_call.1} parent=1 // pred_check
      _
    $region11: #{tpu_custom_call.1} parent=1 // pred_check_branch
      %25 = sbr.rel (0) target = $region13
    $region12: #{tpu_custom_call.1} parent=1 // pred_region
      %s27 = ssub.s32 128, 128
      %28 = vsyncadd [#allocation4], %s27
      %s30 = sshll.u32 [#allocation7], 4
      %s31 = int_to_ptr.vmem [resolvable:$true] %s30
      %33 = dma.hbm_to_vmem [thread:$0]  %s2, 128, %s31, [#allocation4]
    $region13: #{tpu_custom_call.1} parent=1 // pred_fallthru
      _
    // Predicated region
    $region14: #{tpu_custom_call.1} parent=1 // pred_check
      _
    $region15: #{tpu_custom_call.1} parent=1 // pred_check_branch
      %35 = sbr.rel (0) target = $region17
    $region16: #{tpu_custom_call.1} parent=1 // pred_region
      %36 = dma.done [#allocation6], 16
    $region17: #{tpu_custom_call.1} parent=1 // pred_fallthru
      _
    // Predicated region
    $region18: #{tpu_custom_call.1} parent=1 // pred_check
      _
    $region19: #{tpu_custom_call.1} parent=1 // pred_check_branch
      %38 = sbr.rel (0) target = $region21
    $region20: #{tpu_custom_call.1} parent=1 // pred_region
      %39 = dma.done [#allocation4], 128
    $region21: #{tpu_custom_call.1} parent=1 // pred_fallthru
      _
    %40 = sfence
    %v41 = vld [vmem:[#allocation7] sm:$0xff]
    %s42 = sld [smem:[#allocation3]]
    %v43 = vstv %s42
    %v44 = vmul.f32 %v43, %v41
    %s45 = sld [smem:[#allocation2]]
    %v46 = vstv %s45
    %v47 = vadd.f32 %v44, %v46
    %s48 = sld [smem:[#allocation3 + $0x1]]
    %v49 = vstv %s48
    %v50 = vmul.f32 %v49, %v41
    %52 = vrot.lane.b32.xlu0 %v50, 127
    %v53 = vpop.permute.xlu0 %52
    %v55 = vadd.f32 %v47, %v53
    %vm56 = vcmask 56320
    %57 = vst.msk [vmem:[#allocation8] sm:$0xff] %vm56, %v55
    // Predicated region
    $region22: #{tpu_custom_call.1} parent=1 // pred_check
      _
    $region23: #{tpu_custom_call.1} parent=1 // pred_check_branch
      %59 = sbr.rel (0) target = $region25
    $region24: #{tpu_custom_call.1} parent=1 // pred_region
      %s61 = ssub.s32 128, 128
      %62 = vsyncadd [#allocation5], %s61
      %s64 = sshll.u32 [#allocation8], 4
      %s65 = int_to_ptr.vmem [resolvable:$true] %s64
      %67 = dma.vmem_to_hbm [thread:$0]  %s65, 128, %s3, [#allocation5]
    $region25: #{tpu_custom_call.1} parent=1 // pred_fallthru
      _
    // Predicated region
    $region26: #{tpu_custom_call.1} parent=1 // pred_check
      _
    $region27: #{tpu_custom_call.1} parent=1 // pred_check_branch
      %69 = sbr.rel (0) target = $region29
    $region28: #{tpu_custom_call.1} parent=1 // pred_region
      %70 = dma.done [#allocation5], 128
    $region29: #{tpu_custom_call.1} parent=1 // pred_fallthru
      _
    %71 = vsyncpa [#allocation4], 1
    %72 = vsyncpa [#allocation5], 1
    %73 = vsyncpa [#allocation6], 1

</llo_original>
